<compile_context>
chip_gen: v6e
topology: v6e:2x2x1
jax: 0.10.0
libtpu: 0.0.40
codegen_flags: <defaults>
</compile_context>

<pallas_src>
import jax
import jax.numpy as jnp
from jax.experimental import pallas as pl
from jax.experimental.pallas import tpu as pltpu


def _clr_kernel(x_ref, w1_ref, b1_ref, w2_ref, b2_ref, h_ref, z_ref):
    # x_ref: (TB, C, HW) batch tile of the NCHW feature map (spatial on lanes).
    hw = x_ref.shape[-1]

    # AdaptiveAvgPool2d(1) + flatten(start_dim=1): mean over spatial positions.
    # Accumulate the reduction in f32 regardless of the input dtype (bf16/f32).
    h = jnp.sum(x_ref[...], axis=-1, dtype=jnp.float32) * (1.0 / hw)   # (TB, C)
    h_ref[...] = h.astype(h_ref.dtype)

    # projector: Linear(C, C) -> ReLU -> Linear(C, D).  Operands are cast to
    # the weight dtype so bf16 weights hit the native bf16 MXU path; results
    # accumulate in f32.
    p = jnp.dot(h.astype(w1_ref.dtype), w1_ref[...],
                preferred_element_type=jnp.float32)
    p = jnp.maximum(p + b1_ref[...].astype(jnp.float32), 0.0)
    z = jnp.dot(p.astype(w2_ref.dtype), w2_ref[...],
                preferred_element_type=jnp.float32)
    z = z + b2_ref[...].astype(jnp.float32)

    # F.normalize(z, dim=1): z / max(||z||_2, eps), eps = 1e-12.
    # rsqrt keeps the transcendental on the EUP slot and avoids a VPU divide.
    sumsq = jnp.sum(z * z, axis=-1, keepdims=True)
    z = z * jax.lax.rsqrt(jnp.maximum(sumsq, 1e-24))
    z_ref[...] = z.astype(z_ref.dtype)


def efficient_clr_forward(feat_nchw, w1, b1, w2, b2):
    """feat_nchw: (B, C, H, W) feature map (as extract_features would return).

    Returns (h, z) matching the PyTorch forward: h = pooled features (B, C),
    z = L2-normalized projector output (B, D).
    """
    B, C, H, W = feat_nchw.shape
    D = w2.shape[1]
    HW = H * W

    # Free reshape: consume the NCHW layout directly as (B, C, HW); the kernel
    # reduces over the last (spatial) axis.  No transpose pass over HBM.
    x = feat_nchw.reshape(B, C, HW)
    b1_2d = b1.reshape(1, C)
    b2_2d = b2.reshape(1, D)

    # Batch tile: keep the double-buffered input tile <= ~8 MiB so the whole
    # working set (incl. resident projector weights) stays within scoped VMEM
    # on v5e (16 MiB default) / v6e / v7x (64 MiB physical), while remaining
    # large enough to pipeline the HBM-bound feature-map read.
    itembytes = x.dtype.itemsize
    TB = min(B, 128)
    while TB > 8 and 2 * TB * HW * C * itembytes > 8 * 1024 * 1024:
        TB = max(8, TB // 2)
    if TB < B:
        TB = max(8, (TB // 8) * 8)   # sublane-aligned when actually tiling B
    grid = (pl.cdiv(B, TB),)

    out_dtype = feat_nchw.dtype
    out_shapes = (
        jax.ShapeDtypeStruct((B, C), out_dtype),
        jax.ShapeDtypeStruct((B, D), out_dtype),
    )
    in_specs = [
        pl.BlockSpec((TB, C, HW), lambda i: (i, 0, 0)),   # batch-tiled features
        pl.BlockSpec((C, C), lambda i: (0, 0)),           # weights stay resident
        pl.BlockSpec((1, C), lambda i: (0, 0)),
        pl.BlockSpec((C, D), lambda i: (0, 0)),
        pl.BlockSpec((1, D), lambda i: (0, 0)),
    ]
    out_specs = (
        pl.BlockSpec((TB, C), lambda i: (i, 0)),
        pl.BlockSpec((TB, D), lambda i: (i, 0)),
    )

    return pl.pallas_call(
        _clr_kernel,
        out_shape=out_shapes,
        grid=grid,
        in_specs=in_specs,
        out_specs=out_specs,
        compiler_params=pltpu.CompilerParams(
            # Batch tiles are independent -> "parallel" shards grid iterations
            # across v7x's two TensorCores; harmless on v5e/v6e.
            dimension_semantics=("parallel",),
            # Explicit scoped-VMEM limit that is safe on every generation
            # (v5e default is only 16 MiB; v7x physical is 64 MiB).
            vmem_limit_bytes=32 * 1024 * 1024,
        ),
    )(x, w1, b1_2d, w2, b2_2d)


if __name__ == "__main__":
    # Small, tile-friendly shapes consistent with the module:
    #   num_ftrs (backbone channels) = 128, out_dim = 64, spatial 8x8, batch 2.
    B, C, H, W = 2, 128, 8, 8
    D = 64

    key = jax.random.PRNGKey(0)
    k_feat, k_w1, k_b1, k_w2, k_b2 = jax.random.split(key, 5)

    feat = jax.random.normal(k_feat, (B, C, H, W), dtype=jnp.float32)

    # Deterministic parameter init (projector: Linear(C,C), ReLU, Linear(C,D)).
    w1 = jax.random.normal(k_w1, (C, C), dtype=jnp.float32) * (1.0 / jnp.sqrt(C))
    b1 = jax.random.normal(k_b1, (C,), dtype=jnp.float32) * 0.01
    w2 = jax.random.normal(k_w2, (C, D), dtype=jnp.float32) * (1.0 / jnp.sqrt(C))
    b2 = jax.random.normal(k_b2, (D,), dtype=jnp.float32) * 0.01

    h_out, z_out = efficient_clr_forward(feat, w1, b1, w2, b2)
    jax.block_until_ready((h_out, z_out))

    # Sanity check against a plain-JAX reference of the PyTorch forward.
    h_ref = jnp.mean(feat, axis=(2, 3))
    p_ref = jnp.maximum(h_ref @ w1 + b1, 0.0)
    z_raw = p_ref @ w2 + b2
    z_ref = z_raw / jnp.maximum(
        jnp.linalg.norm(z_raw, axis=1, keepdims=True), 1e-12)
    assert jnp.allclose(h_out, h_ref, atol=1e-5, rtol=1e-5)
    assert jnp.allclose(z_out, z_ref, atol=1e-5, rtol=1e-5)

    print("KERNEL_OK")
</pallas_src>

<mosaic_0001>
module attributes {stable_mosaic.version = 11 : i64} {
  func.func @_clr_kernel(%arg0: i32, %arg1: memref<2x128x64xf32, #tpu.memory_space<vmem>>, %arg2: memref<128x128xf32, #tpu.memory_space<vmem>>, %arg3: memref<1x128xf32, #tpu.memory_space<vmem>>, %arg4: memref<128x64xf32, #tpu.memory_space<vmem>>, %arg5: memref<1x64xf32, #tpu.memory_space<vmem>>, %arg6: memref<2x128xf32, #tpu.memory_space<vmem>>, %arg7: memref<2x64xf32, #tpu.memory_space<vmem>>) attributes {dimension_semantics = [#tpu.dimension_semantics<parallel>], iteration_bounds = array<i64: 1>, scalar_prefetch = 0 : i64, scratch_operands = 0 : i64, tpu.core_type = #tpu.core_type<tc>, window_params = [{transform_indices = @transform_0, window_bounds = array<i64: 2, 128, 64>}, {pipeline_mode = #tpu.pipeline_mode<synchronous>, transform_indices = @transform_1, window_bounds = array<i64: 128, 128>}, {pipeline_mode = #tpu.pipeline_mode<synchronous>, transform_indices = @transform_2, window_bounds = array<i64: 1, 128>}, {pipeline_mode = #tpu.pipeline_mode<synchronous>, transform_indices = @transform_3, window_bounds = array<i64: 128, 64>}, {pipeline_mode = #tpu.pipeline_mode<synchronous>, transform_indices = @transform_4, window_bounds = array<i64: 1, 64>}, {transform_indices = @transform_5, window_bounds = array<i64: 2, 128>}, {transform_indices = @transform_6, window_bounds = array<i64: 2, 64>}]} {
    %c0 = arith.constant 0 : index
    %c0_0 = arith.constant 0 : index
    %c0_1 = arith.constant 0 : index
    %0 = vector.load %arg1[%c0, %c0_0, %c0_1] : memref<2x128x64xf32, #tpu.memory_space<vmem>>, vector<2x128x64xf32>
    %cst = arith.constant dense<0.000000e+00> : vector<2x128xf32>
    %1 = vector.multi_reduction <add>, %0, %cst [2] : vector<2x128x64xf32> to vector<2x128xf32>
    %cst_2 = arith.constant 1.562500e-02 : f32
    %2 = vector.broadcast %cst_2 : f32 to vector<2x128xf32>
    %3 = arith.mulf %1, %2 : vector<2x128xf32>
    %c0_3 = arith.constant 0 : index
    %c0_4 = arith.constant 0 : index
    %4 = vector.load %arg6[%c0_3, %c0_4] : memref<2x128xf32, #tpu.memory_space<vmem>>, vector<2x128xf32>
    tpu.vector_store %arg6[%c0_3, %c0_4], %3 {strides = array<i32>} : memref<2x128xf32, #tpu.memory_space<vmem>>, vector<2x128xf32>,
    %c0_5 = arith.constant 0 : index
    %c0_6 = arith.constant 0 : index
    %5 = vector.load %arg2[%c0_5, %c0_6] : memref<128x128xf32, #tpu.memory_space<vmem>>, vector<128x128xf32>
    %cst_7 = arith.constant dense<0.000000e+00> : vector<2x128xf32>
    %6 = tpu.matmul %3, %5, %cst_7 {dimension_numbers = #tpu.dot_dimension_numbers<[1], [0], [0], [1], [0, 0, 1, 1], [], []>} : vector<2x128xf32>, vector<128x128xf32>, vector<2x128xf32> -> vector<2x128xf32>
    %c0_8 = arith.constant 0 : index
    %c0_9 = arith.constant 0 : index
    %7 = vector.load %arg3[%c0_8, %c0_9] : memref<1x128xf32, #tpu.memory_space<vmem>>, vector<1x128xf32>
    %8 = vector.broadcast %7 : vector<1x128xf32> to vector<2x128xf32>
    %9 = arith.addf %6, %8 : vector<2x128xf32>
    %cst_10 = arith.constant 0.000000e+00 : f32
    %10 = vector.broadcast %cst_10 : f32 to vector<2x128xf32>
    %11 = arith.maximumf %9, %10 : vector<2x128xf32>
    %c0_11 = arith.constant 0 : index
    %c0_12 = arith.constant 0 : index
    %12 = vector.load %arg4[%c0_11, %c0_12] : memref<128x64xf32, #tpu.memory_space<vmem>>, vector<128x64xf32>
    %cst_13 = arith.constant dense<0.000000e+00> : vector<2x64xf32>
    %13 = tpu.matmul %11, %12, %cst_13 {dimension_numbers = #tpu.dot_dimension_numbers<[1], [0], [0], [1], [0, 0, 1, 1], [], []>} : vector<2x128xf32>, vector<128x64xf32>, vector<2x64xf32> -> vector<2x64xf32>
    %c0_14 = arith.constant 0 : index
    %c0_15 = arith.constant 0 : index
    %14 = vector.load %arg5[%c0_14, %c0_15] : memref<1x64xf32, #tpu.memory_space<vmem>>, vector<1x64xf32>
    %15 = vector.broadcast %14 : vector<1x64xf32> to vector<2x64xf32>
    %16 = arith.addf %13, %15 : vector<2x64xf32>
    %17 = arith.mulf %16, %16 : vector<2x64xf32>
    %cst_16 = arith.constant dense<0.000000e+00> : vector<2xf32>
    %18 = vector.multi_reduction <add>, %17, %cst_16 [1] : vector<2x64xf32> to vector<2xf32>
    %19 = vector.shape_cast %18 : vector<2xf32> to vector<2x1xf32>
    %cst_17 = arith.constant 1.000000e-24 : f32
    %20 = vector.broadcast %cst_17 : f32 to vector<2x1xf32>
    %21 = arith.maximumf %19, %20 : vector<2x1xf32>
    %22 = math.rsqrt %21 : vector<2x1xf32>
    %23 = vector.broadcast %22 : vector<2x1xf32> to vector<2x64xf32>
    %24 = arith.mulf %16, %23 : vector<2x64xf32>
    %c0_18 = arith.constant 0 : index
    %c0_19 = arith.constant 0 : index
    %25 = vector.load %arg7[%c0_18, %c0_19] : memref<2x64xf32, #tpu.memory_space<vmem>>, vector<2x64xf32>
    tpu.vector_store %arg7[%c0_18, %c0_19], %24 {strides = array<i32>} : memref<2x64xf32, #tpu.memory_space<vmem>>, vector<2x64xf32>,
    return
  }
  func.func @transform_0(%arg0: i32) -> (i32, i32, i32) {
    %c0_i32 = arith.constant 0 : i32
    %c0_i32_0 = arith.constant 0 : i32
    %c0_i32_1 = arith.constant 0 : i32
    return %arg0, %c0_i32, %c0_i32_0 : i32, i32, i32
  }
  func.func @transform_1(%arg0: i32) -> (i32, i32) {
    %c0_i32 = arith.constant 0 : i32
    %c0_i32_0 = arith.constant 0 : i32
    %c0_i32_1 = arith.constant 0 : i32
    return %c0_i32, %c0_i32_0 : i32, i32
  }
  func.func @transform_2(%arg0: i32) -> (i32, i32) {
    %c0_i32 = arith.constant 0 : i32
    %c0_i32_0 = arith.constant 0 : i32
    %c0_i32_1 = arith.constant 0 : i32
    return %c0_i32, %c0_i32_0 : i32, i32
  }
  func.func @transform_3(%arg0: i32) -> (i32, i32) {
    %c0_i32 = arith.constant 0 : i32
    %c0_i32_0 = arith.constant 0 : i32
    %c0_i32_1 = arith.constant 0 : i32
    return %c0_i32, %c0_i32_0 : i32, i32
  }
  func.func @transform_4(%arg0: i32) -> (i32, i32) {
    %c0_i32 = arith.constant 0 : i32
    %c0_i32_0 = arith.constant 0 : i32
    %c0_i32_1 = arith.constant 0 : i32
    return %c0_i32, %c0_i32_0 : i32, i32
  }
  func.func @transform_5(%arg0: i32) -> (i32, i32) {
    %c0_i32 = arith.constant 0 : i32
    %c0_i32_0 = arith.constant 0 : i32
    return %arg0, %c0_i32 : i32, i32
  }
  func.func @transform_6(%arg0: i32) -> (i32, i32) {
    %c0_i32 = arith.constant 0 : i32
    %c0_i32_0 = arith.constant 0 : i32
    return %arg0, %c0_i32 : i32, i32
  }
}

</mosaic_0001>

<llo_original>
// kernel: tpu_custom_call.1
$region0: #{tpu_custom_call.1}
  #allocation0 [shape = 'u32[]', space=smem, size = 0x4, offset = 0x4, fixed_abs, tag = 'smem constant byte address 0x4 - core index']
  #allocation1 [shape = 'u32[144,128]{1,0:T(1,128)}', space=vmem, size = 0x12000, scoped, tag = 'internal scratch']
  %s0 = inlined_call_operand.vmem [shape: f32[2,128,64], index: 0, kind: input, shape index: {}]
  %s1 = inlined_call_operand.vmem [shape: f32[128,128], index: 1, kind: input, shape index: {}]
  %s2 = inlined_call_operand.vmem [shape: f32[1,128], index: 2, kind: input, shape index: {}]
  %s3 = inlined_call_operand.vmem [shape: f32[128,64], index: 3, kind: input, shape index: {}]
  %s4 = inlined_call_operand.vmem [shape: f32[1,64], index: 4, kind: input, shape index: {}]
  %s5 = inlined_call_operand.hbm [shape: f32[2,128], index: 5, kind: output, shape index: {0}]
  %s6 = inlined_call_operand.hbm [shape: f32[2,64], index: 6, kind: output, shape index: {1}]
  %7 = xla_tuple %s5, %s6
  %s8 = sld [smem:[#allocation0]]
  $region38: #{tpu_custom_call.1} parent=0
    _
  %s10 = ssub.s32 1, %s8
  %s11 = scalar_select 0, %s10, %s8
  $region1: #{tpu_custom_call.1} parent=0
    #allocation2 [shape = 'u8[1024]{0}', space=vmem, size = 0x400, scoped, tag = 'output window, operand 0, single buffered']
    #allocation3 [shape = 's32[1]{0}', space=sflag, size = 0x4, scoped, tag = 'scoped memory for tpu_custom_call.1']
    #allocation4 [shape = 'u8[1024]{0}', space=vmem, size = 0x400, scoped, tag = 'output window, operand 1, single buffered']
    #allocation5 [shape = 's32[1]{0}', space=sflag, size = 0x4, scoped, tag = 'scoped memory for tpu_custom_call.1']
    %12 = vsyncpa [#allocation3], 0
    %13 = vsyncpa [#allocation5], 0
    // Predicated region
    $region2: #{tpu_custom_call.1} parent=1 // pred_check
      _
    $region3: #{tpu_custom_call.1} parent=1 // pred_check_branch
      %15 = sbr.rel (0) target = $region5
    $region4: #{tpu_custom_call.1} parent=1 // pred_region
      _
    $region5: #{tpu_custom_call.1} parent=1 // pred_fallthru
      _
    // Predicated region
    $region6: #{tpu_custom_call.1} parent=1 // pred_check
      _
    $region7: #{tpu_custom_call.1} parent=1 // pred_check_branch
      %17 = sbr.rel (0) target = $region9
    $region8: #{tpu_custom_call.1} parent=1 // pred_region
      _
    $region9: #{tpu_custom_call.1} parent=1 // pred_fallthru
      _
    // Predicated region
    $region10: #{tpu_custom_call.1} parent=1 // pred_check
      _
    $region11: #{tpu_custom_call.1} parent=1 // pred_check_branch
      %19 = sbr.rel (0) target = $region13
    $region12: #{tpu_custom_call.1} parent=1 // pred_region
      _
    $region13: #{tpu_custom_call.1} parent=1 // pred_fallthru
      _
    // Predicated region
    $region14: #{tpu_custom_call.1} parent=1 // pred_check
      _
    $region15: #{tpu_custom_call.1} parent=1 // pred_check_branch
      %21 = sbr.rel (0) target = $region17
    $region16: #{tpu_custom_call.1} parent=1 // pred_region
      _
    $region17: #{tpu_custom_call.1} parent=1 // pred_fallthru
      _
    // Predicated region
    $region18: #{tpu_custom_call.1} parent=1 // pred_check
      _
    $region19: #{tpu_custom_call.1} parent=1 // pred_check_branch
      %23 = sbr.rel (0) target = $region21
    $region20: #{tpu_custom_call.1} parent=1 // pred_region
      _
    $region21: #{tpu_custom_call.1} parent=1 // pred_fallthru
      _
    %v24 = vld [vmem:[%s0] sm:$0xff]
    %v25 = vld [vmem:[%s0 + $0x8] sm:$0xff]
    %v26 = vld [vmem:[%s0 + $0x10] sm:$0xff]
    %v27 = vld [vmem:[%s0 + $0x18] sm:$0xff]
    %v28 = vld [vmem:[%s0 + $0x20] sm:$0xff]
    %v29 = vld [vmem:[%s0 + $0x28] sm:$0xff]
    %v30 = vld [vmem:[%s0 + $0x30] sm:$0xff]
    %v31 = vld [vmem:[%s0 + $0x38] sm:$0xff]
    %v32 = vld [vmem:[%s0 + $0x40] sm:$0xff]
    %v33 = vld [vmem:[%s0 + $0x48] sm:$0xff]
    %v34 = vld [vmem:[%s0 + $0x50] sm:$0xff]
    %v35 = vld [vmem:[%s0 + $0x58] sm:$0xff]
    %v36 = vld [vmem:[%s0 + $0x60] sm:$0xff]
    %v37 = vld [vmem:[%s0 + $0x68] sm:$0xff]
    %v38 = vld [vmem:[%s0 + $0x70] sm:$0xff]
    %v39 = vld [vmem:[%s0 + $0x78] sm:$0xff]
    %v40 = vld [vmem:[%s0 + $0x80] sm:$0xff]
    %v41 = vld [vmem:[%s0 + $0x88] sm:$0xff]
    %v42 = vld [vmem:[%s0 + $0x90] sm:$0xff]
    %v43 = vld [vmem:[%s0 + $0x98] sm:$0xff]
    %v44 = vld [vmem:[%s0 + $0xa0] sm:$0xff]
    %v45 = vld [vmem:[%s0 + $0xa8] sm:$0xff]
    %v46 = vld [vmem:[%s0 + $0xb0] sm:$0xff]
    %v47 = vld [vmem:[%s0 + $0xb8] sm:$0xff]
    %v48 = vld [vmem:[%s0 + $0xc0] sm:$0xff]
    %v49 = vld [vmem:[%s0 + $0xc8] sm:$0xff]
    %v50 = vld [vmem:[%s0 + $0xd0] sm:$0xff]
    %v51 = vld [vmem:[%s0 + $0xd8] sm:$0xff]
    %v52 = vld [vmem:[%s0 + $0xe0] sm:$0xff]
    %v53 = vld [vmem:[%s0 + $0xe8] sm:$0xff]
    %v54 = vld [vmem:[%s0 + $0xf0] sm:$0xff]
    %v55 = vld [vmem:[%s0 + $0xf8] sm:$0xff]
    %vm56 = vcmask 523264
    %v57 = vsel %vm56, %v24, 0.0
    %58 = vadd.xlane.f32.xlu0 %v57
    %v59 = vpop.xlane.xlu0 %58
    %v60 = vsel %vm56, %v25, 0.0
    %61 = vadd.xlane.f32.xlu0 %v60
    %v62 = vpop.xlane.xlu0 %61
    %v63 = vsel %vm56, %v26, 0.0
    %64 = vadd.xlane.f32.xlu0 %v63
    %v65 = vpop.xlane.xlu0 %64
    %v66 = vsel %vm56, %v27, 0.0
    %67 = vadd.xlane.f32.xlu0 %v66
    %v68 = vpop.xlane.xlu0 %67
    %v69 = vsel %vm56, %v28, 0.0
    %70 = vadd.xlane.f32.xlu0 %v69
    %v71 = vpop.xlane.xlu0 %70
    %v72 = vsel %vm56, %v29, 0.0
    %73 = vadd.xlane.f32.xlu0 %v72
    %v74 = vpop.xlane.xlu0 %73
    %v75 = vsel %vm56, %v30, 0.0
    %76 = vadd.xlane.f32.xlu0 %v75
    %v77 = vpop.xlane.xlu0 %76
    %v78 = vsel %vm56, %v31, 0.0
    %79 = vadd.xlane.f32.xlu0 %v78
    %v80 = vpop.xlane.xlu0 %79
    %v81 = vsel %vm56, %v32, 0.0
    %82 = vadd.xlane.f32.xlu0 %v81
    %v83 = vpop.xlane.xlu0 %82
    %v84 = vsel %vm56, %v33, 0.0
    %85 = vadd.xlane.f32.xlu0 %v84
    %v86 = vpop.xlane.xlu0 %85
    %v87 = vsel %vm56, %v34, 0.0
    %88 = vadd.xlane.f32.xlu0 %v87
    %v89 = vpop.xlane.xlu0 %88
    %v90 = vsel %vm56, %v35, 0.0
    %91 = vadd.xlane.f32.xlu0 %v90
    %v92 = vpop.xlane.xlu0 %91
    %v93 = vsel %vm56, %v36, 0.0
    %94 = vadd.xlane.f32.xlu0 %v93
    %v95 = vpop.xlane.xlu0 %94
    %v96 = vsel %vm56, %v37, 0.0
    %97 = vadd.xlane.f32.xlu0 %v96
    %v98 = vpop.xlane.xlu0 %97
    %v99 = vsel %vm56, %v38, 0.0
    %100 = vadd.xlane.f32.xlu0 %v99
    %v101 = vpop.xlane.xlu0 %100
    %v102 = vsel %vm56, %v39, 0.0
    %103 = vadd.xlane.f32.xlu0 %v102
    %v104 = vpop.xlane.xlu0 %103
    %v105 = vsel %vm56, %v40, 0.0
    %106 = vadd.xlane.f32.xlu0 %v105
    %v107 = vpop.xlane.xlu0 %106
    %v108 = vsel %vm56, %v41, 0.0
    %109 = vadd.xlane.f32.xlu0 %v108
    %v110 = vpop.xlane.xlu0 %109
    %v111 = vsel %vm56, %v42, 0.0
    %112 = vadd.xlane.f32.xlu0 %v111
    %v113 = vpop.xlane.xlu0 %112
    %v114 = vsel %vm56, %v43, 0.0
    %115 = vadd.xlane.f32.xlu0 %v114
    %v116 = vpop.xlane.xlu0 %115
    %v117 = vsel %vm56, %v44, 0.0
    %118 = vadd.xlane.f32.xlu0 %v117
    %v119 = vpop.xlane.xlu0 %118
    %v120 = vsel %vm56, %v45, 0.0
    %121 = vadd.xlane.f32.xlu0 %v120
    %v122 = vpop.xlane.xlu0 %121
    %v123 = vsel %vm56, %v46, 0.0
    %124 = vadd.xlane.f32.xlu0 %v123
    %v125 = vpop.xlane.xlu0 %124
    %v126 = vsel %vm56, %v47, 0.0
    %127 = vadd.xlane.f32.xlu0 %v126
    %v128 = vpop.xlane.xlu0 %127
    %v129 = vsel %vm56, %v48, 0.0
    %130 = vadd.xlane.f32.xlu0 %v129
    %v131 = vpop.xlane.xlu0 %130
    %v132 = vsel %vm56, %v49, 0.0
    %133 = vadd.xlane.f32.xlu0 %v132
    %v134 = vpop.xlane.xlu0 %133
    %v135 = vsel %vm56, %v50, 0.0
    %136 = vadd.xlane.f32.xlu0 %v135
    %v137 = vpop.xlane.xlu0 %136
    %v138 = vsel %vm56, %v51, 0.0
    %139 = vadd.xlane.f32.xlu0 %v138
    %v140 = vpop.xlane.xlu0 %139
    %v141 = vsel %vm56, %v52, 0.0
    %142 = vadd.xlane.f32.xlu0 %v141
    %v143 = vpop.xlane.xlu0 %142
    %v144 = vsel %vm56, %v53, 0.0
    %145 = vadd.xlane.f32.xlu0 %v144
    %v146 = vpop.xlane.xlu0 %145
    %v147 = vsel %vm56, %v54, 0.0
    %148 = vadd.xlane.f32.xlu0 %v147
    %v149 = vpop.xlane.xlu0 %148
    %v150 = vsel %vm56, %v55, 0.0
    %151 = vadd.xlane.f32.xlu0 %v150
    %v152 = vpop.xlane.xlu0 %151
    %v153 = vmul.f32 %v59, 0.015625
    %v154 = vmul.f32 %v62, 0.015625
    %v155 = vmul.f32 %v65, 0.015625
    %v156 = vmul.f32 %v68, 0.015625
    %v157 = vmul.f32 %v71, 0.015625
    %v158 = vmul.f32 %v74, 0.015625
    %v159 = vmul.f32 %v77, 0.015625
    %v160 = vmul.f32 %v80, 0.015625
    %v161 = vmul.f32 %v83, 0.015625
    %v162 = vmul.f32 %v86, 0.015625
    %v163 = vmul.f32 %v89, 0.015625
    %v164 = vmul.f32 %v92, 0.015625
    %v165 = vmul.f32 %v95, 0.015625
    %v166 = vmul.f32 %v98, 0.015625
    %v167 = vmul.f32 %v101, 0.015625
    %v168 = vmul.f32 %v104, 0.015625
    %v169 = vmul.f32 %v107, 0.015625
    %v170 = vmul.f32 %v110, 0.015625
    %v171 = vmul.f32 %v113, 0.015625
    %v172 = vmul.f32 %v116, 0.015625
    %v173 = vmul.f32 %v119, 0.015625
    %v174 = vmul.f32 %v122, 0.015625
    %v175 = vmul.f32 %v125, 0.015625
    %v176 = vmul.f32 %v128, 0.015625
    %v177 = vmul.f32 %v131, 0.015625
    %v178 = vmul.f32 %v134, 0.015625
    %v179 = vmul.f32 %v137, 0.015625
    %v180 = vmul.f32 %v140, 0.015625
    %v181 = vmul.f32 %v143, 0.015625
    %v182 = vmul.f32 %v146, 0.015625
    %v183 = vmul.f32 %v149, 0.015625
    %v184 = vmul.f32 %v152, 0.015625
    %v217 = vlaneseq
    %v218 = vand.u32 %v217, 127
    %v219 = vlaneseq
    %v220 = vshrl.u32 %v219, 7
    %v221 = vsub.s32 %v218, %v220
    %v222 = vrot.slane %v153, %v221
    %v223 = vadd.s32 %v218, 4294967288
    %v224 = vlaneseq
    %v225 = vshrl.u32 %v224, 7
    %v226 = vsub.s32 %v223, %v225
    %v227 = vrot.slane %v154, %v226
    %vm228 = vcmask 130112
    %v229 = vsel %vm228, %v227, %v222
    %v230 = vadd.s32 %v218, 4294967280
    %v231 = vlaneseq
    %v232 = vshrl.u32 %v231, 7
    %v233 = vsub.s32 %v230, %v232
    %v234 = vrot.slane %v155, %v233
    %vm235 = vcmask 195712
    %v236 = vsel %vm235, %v234, %v229
    %v237 = vadd.s32 %v218, 4294967272
    %v238 = vlaneseq
    %v239 = vshrl.u32 %v238, 7
    %v240 = vsub.s32 %v237, %v239
    %v241 = vrot.slane %v156, %v240
    %vm242 = vcmask 261312
    %v243 = vsel %vm242, %v241, %v236
    %v244 = vadd.s32 %v218, 4294967264
    %v245 = vlaneseq
    %v246 = vshrl.u32 %v245, 7
    %v247 = vsub.s32 %v244, %v246
    %v248 = vrot.slane %v157, %v247
    %vm249 = vcmask 326912
    %v250 = vsel %vm249, %v248, %v243
    %v251 = vadd.s32 %v218, 4294967256
    %v252 = vlaneseq
    %v253 = vshrl.u32 %v252, 7
    %v254 = vsub.s32 %v251, %v253
    %v255 = vrot.slane %v158, %v254
    %vm256 = vcmask 392512
    %v257 = vsel %vm256, %v255, %v250
    %v258 = vadd.s32 %v218, 4294967248
    %v259 = vlaneseq
    %v260 = vshrl.u32 %v259, 7
    %v261 = vsub.s32 %v258, %v260
    %v262 = vrot.slane %v159, %v261
    %vm263 = vcmask 458112
    %v264 = vsel %vm263, %v262, %v257
    %v265 = vadd.s32 %v218, 4294967240
    %v266 = vlaneseq
    %v267 = vshrl.u32 %v266, 7
    %v268 = vsub.s32 %v265, %v267
    %v269 = vrot.slane %v160, %v268
    %vm270 = vcmask 523712
    %v271 = vsel %vm270, %v269, %v264
    %v272 = vadd.s32 %v218, 4294967232
    %v273 = vlaneseq
    %v274 = vshrl.u32 %v273, 7
    %v275 = vsub.s32 %v272, %v274
    %v276 = vrot.slane %v161, %v275
    %vm277 = vcmask 589312
    %v278 = vsel %vm277, %v276, %v271
    %v279 = vadd.s32 %v218, 4294967224
    %v280 = vlaneseq
    %v281 = vshrl.u32 %v280, 7
    %v282 = vsub.s32 %v279, %v281
    %v283 = vrot.slane %v162, %v282
    %vm284 = vcmask 654912
    %v285 = vsel %vm284, %v283, %v278
    %v286 = vadd.s32 %v218, 4294967216
    %v287 = vlaneseq
    %v288 = vshrl.u32 %v287, 7
    %v289 = vsub.s32 %v286, %v288
    %v290 = vrot.slane %v163, %v289
    %vm291 = vcmask 720512
    %v292 = vsel %vm291, %v290, %v285
    %v293 = vadd.s32 %v218, 4294967208
    %v294 = vlaneseq
    %v295 = vshrl.u32 %v294, 7
    %v296 = vsub.s32 %v293, %v295
    %v297 = vrot.slane %v164, %v296
    %vm298 = vcmask 786112
    %v299 = vsel %vm298, %v297, %v292
    %v300 = vadd.s32 %v218, 4294967200
    %v301 = vlaneseq
    %v302 = vshrl.u32 %v301, 7
    %v303 = vsub.s32 %v300, %v302
    %v304 = vrot.slane %v165, %v303
    %vm305 = vcmask 851712
    %v306 = vsel %vm305, %v304, %v299
    %v307 = vadd.s32 %v218, 4294967192
    %v308 = vlaneseq
    %v309 = vshrl.u32 %v308, 7
    %v310 = vsub.s32 %v307, %v309
    %v311 = vrot.slane %v166, %v310
    %vm312 = vcmask 917312
    %v313 = vsel %vm312, %v311, %v306
    %v314 = vadd.s32 %v218, 4294967184
    %v315 = vlaneseq
    %v316 = vshrl.u32 %v315, 7
    %v317 = vsub.s32 %v314, %v316
    %v318 = vrot.slane %v167, %v317
    %vm319 = vcmask 982912
    %v320 = vsel %vm319, %v318, %v313
    %v321 = vadd.s32 %v218, 4294967176
    %v322 = vlaneseq
    %v323 = vshrl.u32 %v322, 7
    %v324 = vsub.s32 %v321, %v323
    %v325 = vrot.slane %v168, %v324
    %vm326 = vcmask 1048512
    %v327 = vsel %vm326, %v325, %v320
    %v328 = vlaneseq
    %v329 = vshrl.u32 %v328, 7
    %v330 = vsub.s32 %v218, %v329
    %v331 = vrot.slane %v169, %v330
    %v332 = vlaneseq
    %v333 = vshrl.u32 %v332, 7
    %v334 = vsub.s32 %v223, %v333
    %v335 = vrot.slane %v170, %v334
    %v336 = vsel %vm228, %v335, %v331
    %v337 = vlaneseq
    %v338 = vshrl.u32 %v337, 7
    %v339 = vsub.s32 %v230, %v338
    %v340 = vrot.slane %v171, %v339
    %v341 = vsel %vm235, %v340, %v336
    %v342 = vlaneseq
    %v343 = vshrl.u32 %v342, 7
    %v344 = vsub.s32 %v237, %v343
    %v345 = vrot.slane %v172, %v344
    %v346 = vsel %vm242, %v345, %v341
    %v347 = vlaneseq
    %v348 = vshrl.u32 %v347, 7
    %v349 = vsub.s32 %v244, %v348
    %v350 = vrot.slane %v173, %v349
    %v351 = vsel %vm249, %v350, %v346
    %v352 = vlaneseq
    %v353 = vshrl.u32 %v352, 7
    %v354 = vsub.s32 %v251, %v353
    %v355 = vrot.slane %v174, %v354
    %v356 = vsel %vm256, %v355, %v351
    %v357 = vlaneseq
    %v358 = vshrl.u32 %v357, 7
    %v359 = vsub.s32 %v258, %v358
    %v360 = vrot.slane %v175, %v359
    %v361 = vsel %vm263, %v360, %v356
    %v362 = vlaneseq
    %v363 = vshrl.u32 %v362, 7
    %v364 = vsub.s32 %v265, %v363
    %v365 = vrot.slane %v176, %v364
    %v366 = vsel %vm270, %v365, %v361
    %v367 = vlaneseq
    %v368 = vshrl.u32 %v367, 7
    %v369 = vsub.s32 %v272, %v368
    %v370 = vrot.slane %v177, %v369
    %v371 = vsel %vm277, %v370, %v366
    %v372 = vlaneseq
    %v373 = vshrl.u32 %v372, 7
    %v374 = vsub.s32 %v279, %v373
    %v375 = vrot.slane %v178, %v374
    %v376 = vsel %vm284, %v375, %v371
    %v377 = vlaneseq
    %v378 = vshrl.u32 %v377, 7
    %v379 = vsub.s32 %v286, %v378
    %v380 = vrot.slane %v179, %v379
    %v381 = vsel %vm291, %v380, %v376
    %v382 = vlaneseq
    %v383 = vshrl.u32 %v382, 7
    %v384 = vsub.s32 %v293, %v383
    %v385 = vrot.slane %v180, %v384
    %v386 = vsel %vm298, %v385, %v381
    %v387 = vlaneseq
    %v388 = vshrl.u32 %v387, 7
    %v389 = vsub.s32 %v300, %v388
    %v390 = vrot.slane %v181, %v389
    %v391 = vsel %vm305, %v390, %v386
    %v392 = vlaneseq
    %v393 = vshrl.u32 %v392, 7
    %v394 = vsub.s32 %v307, %v393
    %v395 = vrot.slane %v182, %v394
    %v396 = vsel %vm312, %v395, %v391
    %v397 = vlaneseq
    %v398 = vshrl.u32 %v397, 7
    %v399 = vsub.s32 %v314, %v398
    %v400 = vrot.slane %v183, %v399
    %v401 = vsel %vm319, %v400, %v396
    %v402 = vlaneseq
    %v403 = vshrl.u32 %v402, 7
    %v404 = vsub.s32 %v321, %v403
    %v405 = vrot.slane %v184, %v404
    %v406 = vsel %vm326, %v405, %v401
    %vm407 = vcmask 1041409
    %v408 = vsel %vm407, %v406, %v327
    %410 = vst [vmem:[#allocation2] sm:$0x3] %v408
    %v411 = vld [vmem:[%s1] sm:$0xff]
    %v412 = vld [vmem:[%s1 + $0x8] sm:$0xff]
    %v413 = vld [vmem:[%s1 + $0x10] sm:$0xff]
    %v414 = vld [vmem:[%s1 + $0x18] sm:$0xff]
    %v415 = vld [vmem:[%s1 + $0x20] sm:$0xff]
    %v416 = vld [vmem:[%s1 + $0x28] sm:$0xff]
    %v417 = vld [vmem:[%s1 + $0x30] sm:$0xff]
    %v418 = vld [vmem:[%s1 + $0x38] sm:$0xff]
    %v419 = vld [vmem:[%s1 + $0x40] sm:$0xff]
    %v420 = vld [vmem:[%s1 + $0x48] sm:$0xff]
    %v421 = vld [vmem:[%s1 + $0x50] sm:$0xff]
    %v422 = vld [vmem:[%s1 + $0x58] sm:$0xff]
    %v423 = vld [vmem:[%s1 + $0x60] sm:$0xff]
    %v424 = vld [vmem:[%s1 + $0x68] sm:$0xff]
    %v425 = vld [vmem:[%s1 + $0x70] sm:$0xff]
    %v426 = vld [vmem:[%s1 + $0x78] sm:$0xff]
    %v427 = vld [vmem:[%s2] sm:$0x1]
    %v429 = vlaneseq
    %v430 = vshrl.u32 %v429, 7
    %v431 = vsub.s32 0, %v430
    %v432 = vrot.slane %v427, %v431
    %434 = vmatprep.subr.mxu0 0.0
    %435 = vmatpush1.msra.mxu0 %v426
    %436 = vmatprep.subr.mxu0 0.0
    %437 = vmatpush1.msra.mxu0 %v425
    %438 = vmatprep.subr.mxu0 0.0
    %439 = vmatpush1.msra.mxu0 %v424
    %440 = vmatprep.subr.mxu0 0.0
    %441 = vmatpush1.msra.mxu0 %v423
    %442 = vmatprep.subr.mxu0 0.0
    %443 = vmatpush1.msra.mxu0 %v422
    %444 = vmatprep.subr.mxu0 0.0
    %445 = vmatpush1.msra.mxu0 %v421
    %446 = vmatprep.subr.mxu0 0.0
    %447 = vmatpush1.msra.mxu0 %v420
    %448 = vmatprep.subr.mxu0 0.0
    %449 = vmatpush1.msra.mxu0 %v419
    %450 = vmatprep.subr.mxu0 0.0
    %451 = vmatpush1.msra.mxu0 %v418
    %452 = vmatprep.subr.mxu0 0.0
    %453 = vmatpush1.msra.mxu0 %v417
    %454 = vmatprep.subr.mxu0 0.0
    %455 = vmatpush1.msra.mxu0 %v416
    %456 = vmatprep.subr.mxu0 0.0
    %457 = vmatpush1.msra.mxu0 %v415
    %458 = vmatprep.subr.mxu0 0.0
    %459 = vmatpush1.msra.mxu0 %v414
    %460 = vmatprep.subr.mxu0 0.0
    %461 = vmatpush1.msra.mxu0 %v413
    %462 = vmatprep.subr.mxu0 0.0
    %463 = vmatpush1.msra.mxu0 %v412
    %464 = vmatprep.subr.mxu0 0.0
    %465 = vmatpush1.msra.mxu0 %v411
    %466 = vmatprep.subr.mxu0 0.0
    %467 = vmatpush2.msra.mxu0 0.0
    %468 = vmatprep.subr.mxu0 0.0
    %469 = vmatpush2.msra.mxu0 0.0
    %470 = vmatprep.subr.mxu0 0.0
    %471 = vmatpush2.msra.mxu0 0.0
    %472 = vmatprep.subr.mxu0 0.0
    %473 = vmatpush2.msra.mxu0 0.0
    %474 = vmatprep.subr.mxu0 0.0
    %475 = vmatpush2.msra.mxu0 0.0
    %476 = vmatprep.subr.mxu0 0.0
    %477 = vmatpush2.msra.mxu0 0.0
    %478 = vmatprep.subr.mxu0 0.0
    %479 = vmatpush2.msra.mxu0 0.0
    %480 = vmatprep.subr.mxu0 0.0
    %481 = vmatpush2.msra.mxu0 0.0
    %482 = vmatprep.subr.mxu0 0.0
    %483 = vmatpush2.msra.mxu0 0.0
    %484 = vmatprep.subr.mxu0 0.0
    %485 = vmatpush2.msra.mxu0 0.0
    %486 = vmatprep.subr.mxu0 0.0
    %487 = vmatpush2.msra.mxu0 0.0
    %488 = vmatprep.subr.mxu0 0.0
    %489 = vmatpush2.msra.mxu0 0.0
    %490 = vmatprep.subr.mxu0 0.0
    %491 = vmatpush2.msra.mxu0 0.0
    %492 = vmatprep.subr.mxu0 0.0
    %493 = vmatpush2.msra.mxu0 0.0
    %494 = vmatprep.subr.mxu0 0.0
    %495 = vmatpush2.msra.mxu0 0.0
    %496 = vmatprep.subr.mxu0 0.0
    %497 = vmatpush2.msra.mxu0 0.0
    %498 = vmatprep.mubr.f32.mxu0 0.0
    %499 = vmatmul.mubr.f32.gmra.mxu0 %v408
    %v500 = vpop.f32.mrf.mxu0
    %v501 = vadd.f32 %v432, %v500
    %v502 = vpop.f32.mrf.mxu0
    %503 = vdwg.mxu0
    %v504 = vmax.f32 %v501, 0.0
    %v505 = vld [vmem:[%s3] sm:$0xff]
    %v506 = vld [vmem:[%s3 + $0x8] sm:$0xff]
    %v507 = vld [vmem:[%s3 + $0x10] sm:$0xff]
    %v508 = vld [vmem:[%s3 + $0x18] sm:$0xff]
    %v509 = vld [vmem:[%s3 + $0x20] sm:$0xff]
    %v510 = vld [vmem:[%s3 + $0x28] sm:$0xff]
    %v511 = vld [vmem:[%s3 + $0x30] sm:$0xff]
    %v512 = vld [vmem:[%s3 + $0x38] sm:$0xff]
    %v513 = vld [vmem:[%s3 + $0x40] sm:$0xff]
    %v514 = vld [vmem:[%s3 + $0x48] sm:$0xff]
    %v515 = vld [vmem:[%s3 + $0x50] sm:$0xff]
    %v516 = vld [vmem:[%s3 + $0x58] sm:$0xff]
    %v517 = vld [vmem:[%s3 + $0x60] sm:$0xff]
    %v518 = vld [vmem:[%s3 + $0x68] sm:$0xff]
    %v519 = vld [vmem:[%s3 + $0x70] sm:$0xff]
    %v520 = vld [vmem:[%s3 + $0x78] sm:$0xff]
    %v521 = vld [vmem:[%s4] sm:$0x1]
    %v523 = vlaneseq
    %v524 = vshrl.u32 %v523, 7
    %v525 = vsub.s32 0, %v524
    %v526 = vrot.slane %v521, %v525
    %528 = vmatprep.subr.mxu0 0.0
    %529 = vmatpush1.msra.mxu0 %v520
    %530 = vmatprep.subr.mxu0 0.0
    %531 = vmatpush1.msra.mxu0 %v519
    %532 = vmatprep.subr.mxu0 0.0
    %533 = vmatpush1.msra.mxu0 %v518
    %534 = vmatprep.subr.mxu0 0.0
    %535 = vmatpush1.msra.mxu0 %v517
    %536 = vmatprep.subr.mxu0 0.0
    %537 = vmatpush1.msra.mxu0 %v516
    %538 = vmatprep.subr.mxu0 0.0
    %539 = vmatpush1.msra.mxu0 %v515
    %540 = vmatprep.subr.mxu0 0.0
    %541 = vmatpush1.msra.mxu0 %v514
    %542 = vmatprep.subr.mxu0 0.0
    %543 = vmatpush1.msra.mxu0 %v513
    %544 = vmatprep.subr.mxu0 0.0
    %545 = vmatpush1.msra.mxu0 %v512
    %546 = vmatprep.subr.mxu0 0.0
    %547 = vmatpush1.msra.mxu0 %v511
    %548 = vmatprep.subr.mxu0 0.0
    %549 = vmatpush1.msra.mxu0 %v510
    %550 = vmatprep.subr.mxu0 0.0
    %551 = vmatpush1.msra.mxu0 %v509
    %552 = vmatprep.subr.mxu0 0.0
    %553 = vmatpush1.msra.mxu0 %v508
    %554 = vmatprep.subr.mxu0 0.0
    %555 = vmatpush1.msra.mxu0 %v507
    %556 = vmatprep.subr.mxu0 0.0
    %557 = vmatpush1.msra.mxu0 %v506
    %558 = vmatprep.subr.mxu0 0.0
    %559 = vmatpush1.msra.mxu0 %v505
    %560 = vmatprep.subr.mxu0 0.0
    %561 = vmatpush2.msra.mxu0 0.0
    %562 = vmatprep.subr.mxu0 0.0
    %563 = vmatpush2.msra.mxu0 0.0
    %564 = vmatprep.subr.mxu0 0.0
    %565 = vmatpush2.msra.mxu0 0.0
    %566 = vmatprep.subr.mxu0 0.0
    %567 = vmatpush2.msra.mxu0 0.0
    %568 = vmatprep.subr.mxu0 0.0
    %569 = vmatpush2.msra.mxu0 0.0
    %570 = vmatprep.subr.mxu0 0.0
    %571 = vmatpush2.msra.mxu0 0.0
    %572 = vmatprep.subr.mxu0 0.0
    %573 = vmatpush2.msra.mxu0 0.0
    %574 = vmatprep.subr.mxu0 0.0
    %575 = vmatpush2.msra.mxu0 0.0
    %576 = vmatprep.subr.mxu0 0.0
    %577 = vmatpush2.msra.mxu0 0.0
    %578 = vmatprep.subr.mxu0 0.0
    %579 = vmatpush2.msra.mxu0 0.0
    %580 = vmatprep.subr.mxu0 0.0
    %581 = vmatpush2.msra.mxu0 0.0
    %582 = vmatprep.subr.mxu0 0.0
    %583 = vmatpush2.msra.mxu0 0.0
    %584 = vmatprep.subr.mxu0 0.0
    %585 = vmatpush2.msra.mxu0 0.0
    %586 = vmatprep.subr.mxu0 0.0
    %587 = vmatpush2.msra.mxu0 0.0
    %588 = vmatprep.subr.mxu0 0.0
    %589 = vmatpush2.msra.mxu0 0.0
    %590 = vmatprep.subr.mxu0 0.0
    %591 = vmatpush2.msra.mxu0 0.0
    %592 = vmatprep.mubr.f32.mxu0 0.0
    %593 = vmatmul.mubr.f32.gmra.mxu0 %v504
    %v594 = vpop.f32.mrf.mxu0
    %v595 = vadd.f32 %v526, %v594
    %v596 = vpop.f32.mrf.mxu0
    %597 = vdwg.mxu0
    %v598 = vmul.f32 %v595, %v595
    %vm599 = vcmask 517120
    %v600 = vsel %vm599, %v598, 0.0
    %601 = vadd.xlane.f32.xlu0 %v600
    %v602 = vpop.xlane.xlu0 %601
    %v603 = vmax.f32 %v602, 1e-24
    %v604 = vrsqrt.pop %v603
    %v605 = vmul.f32 %v595, %v604
    %606 = vst.msk [vmem:[#allocation4] sm:$0x3] %vm599, %v605
    // Predicated region
    $region22: #{tpu_custom_call.1} parent=1 // pred_check
      _
    $region23: #{tpu_custom_call.1} parent=1 // pred_check_branch
      %608 = sbr.rel (0) target = $region25
    $region24: #{tpu_custom_call.1} parent=1 // pred_region
      %s610 = ssub.s32 32, 32
      %611 = vsyncadd [#allocation3], %s610
      %s613 = sshll.u32 [#allocation2], 4
      %s614 = int_to_ptr.vmem [resolvable:$true] %s613
      %616 = dma.vmem_to_hbm [thread:$0]  %s614, 32, %s5, [#allocation3]
    $region25: #{tpu_custom_call.1} parent=1 // pred_fallthru
      _
    // Predicated region
    $region26: #{tpu_custom_call.1} parent=1 // pred_check
      _
    $region27: #{tpu_custom_call.1} parent=1 // pred_check_branch
      %618 = sbr.rel (0) target = $region29
    $region28: #{tpu_custom_call.1} parent=1 // pred_region
      %s620 = ssub.s32 32, 32
      %621 = vsyncadd [#allocation5], %s620
      %s623 = sshll.u32 [#allocation4], 4
      %s624 = int_to_ptr.vmem [resolvable:$true] %s623
      %626 = dma.vmem_to_hbm [thread:$0]  %s624, 32, %s6, [#allocation5]
    $region29: #{tpu_custom_call.1} parent=1 // pred_fallthru
      _
    // Predicated region
    $region30: #{tpu_custom_call.1} parent=1 // pred_check
      _
    $region31: #{tpu_custom_call.1} parent=1 // pred_check_branch
      %628 = sbr.rel (0) target = $region33
    $region32: #{tpu_custom_call.1} parent=1 // pred_region
      %629 = dma.done [#allocation3], 32
    $region33: #{tpu_custom_call.1} parent=1 // pred_fallthru
      _
    // Predicated region
    $region34: #{tpu_custom_call.1} parent=1 // pred_check
      _
    $region35: #{tpu_custom_call.1} parent=1 // pred_check_branch
      %631 = sbr.rel (0) target = $region37
    $region36: #{tpu_custom_call.1} parent=1 // pred_region
      %632 = dma.done [#allocation5], 32
    $region37: #{tpu_custom_call.1} parent=1 // pred_fallthru
      _
    %633 = vsyncpa [#allocation3], 1
    %634 = vsyncpa [#allocation5], 1

</llo_original>
